<compile_context>
chip_gen: v7x
topology: tpu7x:2x2x1
jax: 0.10.0
libtpu: 0.0.40
codegen_flags: <defaults>
</compile_context>

<pallas_src>
import math

import jax
import jax.numpy as jnp
from jax import lax
from jax.experimental import pallas as pl
from jax.experimental.pallas import tpu as pltpu


def _round_up(n, m):
    return -(-n // m) * m


# ------------------------------ chip detection --------------------------------

def _chip_info():
    """Returns (is_v7x_like, vmem_capacity_bytes, tensorcores_per_chip)."""
    try:
        kind = jax.devices()[0].device_kind.lower()
    except Exception:
        kind = ""
    is_v7 = ("v7" in kind) or ("7x" in kind)
    try:
        cap = int(pltpu.get_tpu_info().vmem_capacity_bytes)
    except Exception:
        cap = (64 << 20) if is_v7 else (128 << 20)
    return is_v7, cap, (2 if is_v7 else 1)


# ----------------------------- in-kernel helpers -------------------------------

def _layernorm_masked(x, true_width, eps=1e-5):
    """nn.LayerNorm(true_width, elementwise_affine=False) over the first `true_width`
    columns of x.  Columns >= true_width are assumed to be exactly zero (they come
    from zero-padded weight columns + zero bias) and come out as exact zeros again.
    Two-pass variance (mean, then E[(x-mu)^2])."""
    padded = x.shape[-1]
    inv_d = 1.0 / float(true_width)
    mu = jnp.sum(x, axis=-1, keepdims=True) * inv_d          # padded cols contribute 0
    xc = x - mu
    if padded != true_width:
        col = lax.broadcasted_iota(jnp.int32, x.shape, x.ndim - 1)
        xc = jnp.where(col < true_width, xc, 0.0)
    var = jnp.sum(xc * xc, axis=-1, keepdims=True) * inv_d
    return xc * lax.rsqrt(var + eps)


def _mish_fast(x):
    """Mish(x) = x * tanh(softplus(x)) = x * t/(t+2), t = u*(u+2), u = exp(x).
    One EUP exp + one approx reciprocal.  Clamp at 20: for x > 20, t/(t+2) == 1 in
    f32 so mish(x) == x exactly, matching the true function.  mish(0) == 0, so
    zero-padded columns stay zero."""
    u = jnp.exp(jnp.minimum(x, 20.0))
    t = u * (u + 2.0)
    return x * t * pl.reciprocal(t + 2.0, approx=True)


# ---------------------------------- kernel -------------------------------------

def _make_kernel(h1, h2):
    """h1/h2 are the TRUE hidden widths (in//2, in//4); refs may be padded to 128."""

    def kernel(x_ref, w12_ref, b12_ref, w34_ref, b34_ref, w5_ref, b5_ref, o_ref):
        # Block 1: folded Linear(in -> in//2) + LayerNorm + Mish.
        xb = x_ref[...].astype(jnp.bfloat16)          # in-kernel cast: saves an HBM pass
        h = jnp.dot(xb, w12_ref[...], preferred_element_type=jnp.float32) + b12_ref[...]
        h = _mish_fast(_layernorm_masked(h, h1)).astype(jnp.bfloat16)

        # Block 2: folded Linear(in//2 -> in//4) + LayerNorm + Mish.
        h = jnp.dot(h, w34_ref[...], preferred_element_type=jnp.float32) + b34_ref[...]
        h = _mish_fast(_layernorm_masked(h, h2)).astype(jnp.bfloat16)

        # Head: Linear(in//4 -> out_dim), lane-dense (128-multiple) padded output.
        o_ref[...] = (jnp.dot(h, w5_ref[...], preferred_element_type=jnp.float32)
                      + b5_ref[...]).astype(o_ref.dtype)

    return kernel


# ------------------------ one-time parameter preparation -----------------------

def prepare_params(params, *, weight_dtype=jnp.bfloat16):
    """Fold the two adjacent Linears of each block into one affine map, zero-pad the
    hidden/output widths up to multiples of 128 (lane-dense MXU / store layout) and
    cast the MXU weight operands to bf16 (biases stay f32).

    Call this ONCE per parameter set and reuse the result — it is intentionally
    hoisted out of the per-call path."""
    (w1, b1), (w2, b2), (w3, b3), (w4, b4), (w5, b5) = params
    w12 = w1 @ w2
    b12 = b1 @ w2 + b2
    w34 = w3 @ w4
    b34 = b3 @ w4 + b4

    in_dim = w1.shape[0]
    h1, h2, out_dim = w12.shape[1], w34.shape[1], w5.shape[1]
    h1p, h2p, outp = (_round_up(d, 128) for d in (h1, h2, out_dim))

    w12 = jnp.pad(w12, ((0, 0), (0, h1p - h1)))
    b12 = jnp.pad(b12, ((0, 0), (0, h1p - h1)))
    w34 = jnp.pad(w34, ((0, h1p - h1), (0, h2p - h2)))
    b34 = jnp.pad(b34, ((0, 0), (0, h2p - h2)))
    w5p = jnp.pad(w5, ((0, h2p - h2), (0, outp - out_dim)))
    b5p = jnp.pad(b5, ((0, 0), (0, outp - out_dim)))

    w12, w34, w5p = (w.astype(weight_dtype) for w in (w12, w34, w5p))
    b12, b34, b5p = (b.astype(jnp.float32) for b in (b12, b34, b5p))

    return {
        "weights": (w12, b12, w34, b34, w5p, b5p),
        "in_dim": in_dim, "h1": h1, "h2": h2, "out_dim": out_dim,
    }


# --------------------------------- wrapper -------------------------------------

def encoder_mlp(x, prep, *, tb_max=None):
    """x: (B, in_dim) float32.  prep: result of prepare_params (computed once)."""
    B, in_dim = x.shape
    assert in_dim == prep["in_dim"], (in_dim, prep["in_dim"])
    w12, b12, w34, b34, w5, b5 = prep["weights"]
    h1, h2, out_dim = prep["h1"], prep["h2"], prep["out_dim"]
    h1p, h2p, outp = w12.shape[1], w34.shape[1], w5.shape[1]

    is_v7, vmem_cap, num_cores = _chip_info()
    if tb_max is None:
        tb_max = 512 if is_v7 else 1024          # 64 MiB vs 128 MiB physical VMEM

    # --- batch tile selection --------------------------------------------------
    b_pad = _round_up(B, 16)                     # bf16 sublane packing
    tb = min(b_pad, tb_max)
    if num_cores > 1 and b_pad > 16:
        # v7x: make sure the parallel grid has >= num_cores steps so both TCs work.
        tb = min(tb, _round_up(pl.cdiv(b_pad, num_cores), 16))

    # Weight residency: constant index_map => never re-DMA'd.  Single-buffer them
    # when a double-buffered copy would eat a large share of VMEM (v7x, big in_dim).
    w_bytes = sum(int(a.size) * a.dtype.itemsize for a in (w12, b12, w34, b34, w5, b5))
    single_buffer_weights = (2 * w_bytes) > (vmem_cap // 4)
    weight_bufs = 1 if single_buffer_weights else 2

    def vmem_need(tb_):
        act = 2 * tb_ * (in_dim * 4 + outp * 4)                   # dbl-buffered x / out tiles
        live = tb_ * (in_dim * 2 + (h1p + h2p) * 6 + outp * 4)    # rough in-kernel intermediates
        return act + live + weight_bufs * w_bytes + (2 << 20)

    budget = int(vmem_cap * 0.8)
    while tb > 16 and vmem_need(tb) > budget:
        tb = max(16, _round_up(tb // 2, 16))
    b_pad = _round_up(b_pad, tb)

    if b_pad != B:
        # Zero rows are harmless (finite through LN/Mish/matmul) and sliced off below.
        x = jnp.pad(x, ((0, b_pad - B), (0, 0)))

    need = vmem_need(tb)
    vmem_limit = None if need <= (16 << 20) else int(min(need, int(vmem_cap * 0.85)))

    # --- specs -------------------------------------------------------------------
    const = lambda i: (0, 0)
    if single_buffer_weights:
        wspec = lambda a: pl.BlockSpec(a.shape, const, pipeline_mode=pl.Buffered(1))
    else:
        wspec = lambda a: pl.BlockSpec(a.shape, const)

    in_specs = [pl.BlockSpec((tb, in_dim), lambda i: (i, 0))] + \
               [wspec(a) for a in (w12, b12, w34, b34, w5, b5)]
    out_specs = pl.BlockSpec((tb, outp), lambda i: (i, 0))   # lane-dense: outp % 128 == 0

    out_pad = pl.pallas_call(
        _make_kernel(h1, h2),
        out_shape=jax.ShapeDtypeStruct((b_pad, outp), jnp.float32),
        grid_spec=pltpu.PrefetchScalarGridSpec(
            num_scalar_prefetch=0,
            grid=(b_pad // tb,),
            in_specs=in_specs,
            out_specs=out_specs,
        ),
        compiler_params=pltpu.CompilerParams(
            dimension_semantics=("parallel",),
            vmem_limit_bytes=vmem_limit),
    )(x, w12, b12, w34, b34, w5, b5)

    return out_pad[:B, :out_dim]


# ----------------------- init + f32 reference (PyTorch semantics) --------------

def init_params(key, in_dim, out_dim):
    """PyTorch-style Kaiming-uniform (+-1/sqrt(fan_in)) init.
    Returns list of (W, b) with W shaped (fan_in, fan_out), b shaped (1, fan_out)."""
    dims = [(in_dim, in_dim // 2),
            (in_dim // 2, in_dim // 2),
            (in_dim // 2, in_dim // 4),
            (in_dim // 4, in_dim // 4),
            (in_dim // 4, out_dim)]
    params = []
    for (fi, fo) in dims:
        key, kw, kb = jax.random.split(key, 3)
        bound = 1.0 / math.sqrt(fi)
        w = jax.random.uniform(kw, (fi, fo), jnp.float32, -bound, bound)
        b = jax.random.uniform(kb, (1, fo), jnp.float32, -bound, bound)
        params.append((w, b))
    return params


def _mish_exact(x):
    sp = jnp.maximum(x, 0.0) + jnp.log1p(jnp.exp(-jnp.abs(x)))
    return x * jnp.tanh(sp)


def _layernorm_exact(x, eps=1e-5):
    mu = jnp.mean(x, axis=-1, keepdims=True)
    var = jnp.mean((x - mu) * (x - mu), axis=-1, keepdims=True)
    return (x - mu) * lax.rsqrt(var + eps)


def encoder_mlp_ref(x, params):
    (w1, b1), (w2, b2), (w3, b3), (w4, b4), (w5, b5) = params
    h = x @ w1 + b1
    h = h @ w2 + b2
    h = _mish_exact(_layernorm_exact(h))
    h = h @ w3 + b3
    h = h @ w4 + b4
    h = _mish_exact(_layernorm_exact(h))
    return h @ w5 + b5


if __name__ == "__main__":
    in_dim, out_dim = 64, 16
    key = jax.random.PRNGKey(0)
    key, kx1, kx2 = jax.random.split(key, 3)
    params = init_params(key, in_dim, out_dim)

    # Hoisted out of the hot path: fold + pad + bf16 cast happen exactly once.
    prep = prepare_params(params)

    for B, kx in ((16, kx1), (19, kx2)):        # B=19 exercises the ragged-batch path
        x = jax.random.normal(kx, (B, in_dim), jnp.float32)
        out = jax.block_until_ready(encoder_mlp(x, prep))
        ref = encoder_mlp_ref(x, params)
        assert out.shape == (B, out_dim)
        max_err = float(jnp.max(jnp.abs(out - ref)))
        # bf16 MXU operands + folded linears + approx reciprocal => looser tolerance
        # than a pure-f32 path; re-validate at production dims.
        assert jnp.allclose(out, ref, atol=5e-2, rtol=5e-2), f"B={B} max abs err {max_err}"
    print("KERNEL_OK")
</pallas_src>

<mosaic_0001>
module attributes {stable_mosaic.version = 11 : i64} {
  func.func @kernel(%arg0: i32, %arg1: memref<16x64xf32, #tpu.memory_space<vmem>>, %arg2: memref<64x128xbf16, #tpu.memory_space<vmem>>, %arg3: memref<1x128xf32, #tpu.memory_space<vmem>>, %arg4: memref<128x128xbf16, #tpu.memory_space<vmem>>, %arg5: memref<1x128xf32, #tpu.memory_space<vmem>>, %arg6: memref<128x128xbf16, #tpu.memory_space<vmem>>, %arg7: memref<1x128xf32, #tpu.memory_space<vmem>>, %arg8: memref<16x128xf32, #tpu.memory_space<vmem>>) attributes {dimension_semantics = [#tpu.dimension_semantics<parallel>], iteration_bounds = array<i64: 1>, scalar_prefetch = 0 : i64, scratch_operands = 0 : i64, tpu.core_type = #tpu.core_type<tc>, window_params = [{transform_indices = @transform_0, window_bounds = array<i64: 16, 64>}, {pipeline_mode = #tpu.pipeline_mode<synchronous>, transform_indices = @transform_1, window_bounds = array<i64: 64, 128>}, {pipeline_mode = #tpu.pipeline_mode<synchronous>, transform_indices = @transform_2, window_bounds = array<i64: 1, 128>}, {pipeline_mode = #tpu.pipeline_mode<synchronous>, transform_indices = @transform_3, window_bounds = array<i64: 128, 128>}, {pipeline_mode = #tpu.pipeline_mode<synchronous>, transform_indices = @transform_4, window_bounds = array<i64: 1, 128>}, {pipeline_mode = #tpu.pipeline_mode<synchronous>, transform_indices = @transform_5, window_bounds = array<i64: 128, 128>}, {pipeline_mode = #tpu.pipeline_mode<synchronous>, transform_indices = @transform_6, window_bounds = array<i64: 1, 128>}, {transform_indices = @transform_7, window_bounds = array<i64: 16, 128>}]} {
    %c0 = arith.constant 0 : index
    %c0_0 = arith.constant 0 : index
    %0 = vector.load %arg1[%c0, %c0_0] : memref<16x64xf32, #tpu.memory_space<vmem>>, vector<16x64xf32>
    %1 = arith.truncf %0 : vector<16x64xf32> to vector<16x64xbf16>
    %c0_1 = arith.constant 0 : index
    %c0_2 = arith.constant 0 : index
    %2 = vector.load %arg2[%c0_1, %c0_2] : memref<64x128xbf16, #tpu.memory_space<vmem>>, vector<64x128xbf16>
    %cst = arith.constant dense<0.000000e+00> : vector<16x128xf32>
    %3 = tpu.matmul %1, %2, %cst {dimension_numbers = #tpu.dot_dimension_numbers<[1], [0], [0], [1], [0, 0, 1, 1], [], []>} : vector<16x64xbf16>, vector<64x128xbf16>, vector<16x128xf32> -> vector<16x128xf32>
    %c0_3 = arith.constant 0 : index
    %c0_4 = arith.constant 0 : index
    %4 = vector.load %arg3[%c0_3, %c0_4] : memref<1x128xf32, #tpu.memory_space<vmem>>, vector<1x128xf32>
    %5 = vector.broadcast %4 : vector<1x128xf32> to vector<16x128xf32>
    %6 = arith.addf %3, %5 : vector<16x128xf32>
    %cst_5 = arith.constant dense<0.000000e+00> : vector<16xf32>
    %7 = vector.multi_reduction <add>, %6, %cst_5 [1] : vector<16x128xf32> to vector<16xf32>
    %8 = vector.shape_cast %7 : vector<16xf32> to vector<16x1xf32>
    %cst_6 = arith.constant 3.125000e-02 : f32
    %9 = vector.broadcast %cst_6 : f32 to vector<16x1xf32>
    %10 = arith.mulf %8, %9 : vector<16x1xf32>
    %11 = vector.broadcast %10 : vector<16x1xf32> to vector<16x128xf32>
    %12 = arith.subf %6, %11 : vector<16x128xf32>
    %13 = tpu.iota {dimensions = array<i32: 1>} : vector<16x128xi32>
    %c32_i32 = arith.constant 32 : i32
    %14 = vector.broadcast %c32_i32 : i32 to vector<16x128xi32>
    %15 = arith.cmpi slt, %13, %14 : vector<16x128xi32>
    %cst_7 = arith.constant 0.000000e+00 : f32
    %16 = vector.broadcast %cst_7 : f32 to vector<16x128xf32>
    %17 = arith.select %15, %12, %16 : vector<16x128xi1>, vector<16x128xf32>
    %18 = arith.mulf %17, %17 : vector<16x128xf32>
    %cst_8 = arith.constant dense<0.000000e+00> : vector<16xf32>
    %19 = vector.multi_reduction <add>, %18, %cst_8 [1] : vector<16x128xf32> to vector<16xf32>
    %20 = vector.shape_cast %19 : vector<16xf32> to vector<16x1xf32>
    %cst_9 = arith.constant 3.125000e-02 : f32
    %21 = vector.broadcast %cst_9 : f32 to vector<16x1xf32>
    %22 = arith.mulf %20, %21 : vector<16x1xf32>
    %cst_10 = arith.constant 9.99999974E-6 : f32
    %23 = vector.broadcast %cst_10 : f32 to vector<16x1xf32>
    %24 = arith.addf %22, %23 : vector<16x1xf32>
    %25 = math.rsqrt %24 : vector<16x1xf32>
    %26 = vector.broadcast %25 : vector<16x1xf32> to vector<16x128xf32>
    %27 = arith.mulf %17, %26 : vector<16x128xf32>
    %cst_11 = arith.constant 2.000000e+01 : f32
    %28 = vector.broadcast %cst_11 : f32 to vector<16x128xf32>
    %29 = arith.minimumf %27, %28 : vector<16x128xf32>
    %30 = math.exp %29 : vector<16x128xf32>
    %cst_12 = arith.constant 2.000000e+00 : f32
    %31 = vector.broadcast %cst_12 : f32 to vector<16x128xf32>
    %32 = arith.addf %30, %31 : vector<16x128xf32>
    %33 = arith.mulf %30, %32 : vector<16x128xf32>
    %34 = arith.mulf %27, %33 : vector<16x128xf32>
    %cst_13 = arith.constant 2.000000e+00 : f32
    %35 = vector.broadcast %cst_13 : f32 to vector<16x128xf32>
    %36 = arith.addf %33, %35 : vector<16x128xf32>
    %37 = tpu.reciprocal %36 {approx = true} : vector<16x128xf32> -> vector<16x128xf32>
    %38 = arith.mulf %34, %37 : vector<16x128xf32>
    %39 = arith.truncf %38 : vector<16x128xf32> to vector<16x128xbf16>
    %c0_14 = arith.constant 0 : index
    %c0_15 = arith.constant 0 : index
    %40 = vector.load %arg4[%c0_14, %c0_15] : memref<128x128xbf16, #tpu.memory_space<vmem>>, vector<128x128xbf16>
    %cst_16 = arith.constant dense<0.000000e+00> : vector<16x128xf32>
    %41 = tpu.matmul %39, %40, %cst_16 {dimension_numbers = #tpu.dot_dimension_numbers<[1], [0], [0], [1], [0, 0, 1, 1], [], []>} : vector<16x128xbf16>, vector<128x128xbf16>, vector<16x128xf32> -> vector<16x128xf32>
    %c0_17 = arith.constant 0 : index
    %c0_18 = arith.constant 0 : index
    %42 = vector.load %arg5[%c0_17, %c0_18] : memref<1x128xf32, #tpu.memory_space<vmem>>, vector<1x128xf32>
    %43 = vector.broadcast %42 : vector<1x128xf32> to vector<16x128xf32>
    %44 = arith.addf %41, %43 : vector<16x128xf32>
    %cst_19 = arith.constant dense<0.000000e+00> : vector<16xf32>
    %45 = vector.multi_reduction <add>, %44, %cst_19 [1] : vector<16x128xf32> to vector<16xf32>
    %46 = vector.shape_cast %45 : vector<16xf32> to vector<16x1xf32>
    %cst_20 = arith.constant 6.250000e-02 : f32
    %47 = vector.broadcast %cst_20 : f32 to vector<16x1xf32>
    %48 = arith.mulf %46, %47 : vector<16x1xf32>
    %49 = vector.broadcast %48 : vector<16x1xf32> to vector<16x128xf32>
    %50 = arith.subf %44, %49 : vector<16x128xf32>
    %51 = tpu.iota {dimensions = array<i32: 1>} : vector<16x128xi32>
    %c16_i32 = arith.constant 16 : i32
    %52 = vector.broadcast %c16_i32 : i32 to vector<16x128xi32>
    %53 = arith.cmpi slt, %51, %52 : vector<16x128xi32>
    %cst_21 = arith.constant 0.000000e+00 : f32
    %54 = vector.broadcast %cst_21 : f32 to vector<16x128xf32>
    %55 = arith.select %53, %50, %54 : vector<16x128xi1>, vector<16x128xf32>
    %56 = arith.mulf %55, %55 : vector<16x128xf32>
    %cst_22 = arith.constant dense<0.000000e+00> : vector<16xf32>
    %57 = vector.multi_reduction <add>, %56, %cst_22 [1] : vector<16x128xf32> to vector<16xf32>
    %58 = vector.shape_cast %57 : vector<16xf32> to vector<16x1xf32>
    %cst_23 = arith.constant 6.250000e-02 : f32
    %59 = vector.broadcast %cst_23 : f32 to vector<16x1xf32>
    %60 = arith.mulf %58, %59 : vector<16x1xf32>
    %cst_24 = arith.constant 9.99999974E-6 : f32
    %61 = vector.broadcast %cst_24 : f32 to vector<16x1xf32>
    %62 = arith.addf %60, %61 : vector<16x1xf32>
    %63 = math.rsqrt %62 : vector<16x1xf32>
    %64 = vector.broadcast %63 : vector<16x1xf32> to vector<16x128xf32>
    %65 = arith.mulf %55, %64 : vector<16x128xf32>
    %cst_25 = arith.constant 2.000000e+01 : f32
    %66 = vector.broadcast %cst_25 : f32 to vector<16x128xf32>
    %67 = arith.minimumf %65, %66 : vector<16x128xf32>
    %68 = math.exp %67 : vector<16x128xf32>
    %cst_26 = arith.constant 2.000000e+00 : f32
    %69 = vector.broadcast %cst_26 : f32 to vector<16x128xf32>
    %70 = arith.addf %68, %69 : vector<16x128xf32>
    %71 = arith.mulf %68, %70 : vector<16x128xf32>
    %72 = arith.mulf %65, %71 : vector<16x128xf32>
    %cst_27 = arith.constant 2.000000e+00 : f32
    %73 = vector.broadcast %cst_27 : f32 to vector<16x128xf32>
    %74 = arith.addf %71, %73 : vector<16x128xf32>
    %75 = tpu.reciprocal %74 {approx = true} : vector<16x128xf32> -> vector<16x128xf32>
    %76 = arith.mulf %72, %75 : vector<16x128xf32>
    %77 = arith.truncf %76 : vector<16x128xf32> to vector<16x128xbf16>
    %c0_28 = arith.constant 0 : index
    %c0_29 = arith.constant 0 : index
    %78 = vector.load %arg6[%c0_28, %c0_29] : memref<128x128xbf16, #tpu.memory_space<vmem>>, vector<128x128xbf16>
    %cst_30 = arith.constant dense<0.000000e+00> : vector<16x128xf32>
    %79 = tpu.matmul %77, %78, %cst_30 {dimension_numbers = #tpu.dot_dimension_numbers<[1], [0], [0], [1], [0, 0, 1, 1], [], []>} : vector<16x128xbf16>, vector<128x128xbf16>, vector<16x128xf32> -> vector<16x128xf32>
    %c0_31 = arith.constant 0 : index
    %c0_32 = arith.constant 0 : index
    %80 = vector.load %arg7[%c0_31, %c0_32] : memref<1x128xf32, #tpu.memory_space<vmem>>, vector<1x128xf32>
    %81 = vector.broadcast %80 : vector<1x128xf32> to vector<16x128xf32>
    %82 = arith.addf %79, %81 : vector<16x128xf32>
    %c0_33 = arith.constant 0 : index
    %c0_34 = arith.constant 0 : index
    %83 = vector.load %arg8[%c0_33, %c0_34] : memref<16x128xf32, #tpu.memory_space<vmem>>, vector<16x128xf32>
    tpu.vector_store %arg8[%c0_33, %c0_34], %82 {strides = array<i32>} : memref<16x128xf32, #tpu.memory_space<vmem>>, vector<16x128xf32>,
    return
  }
  func.func @transform_0(%arg0: i32) -> (i32, i32) {
    %c0_i32 = arith.constant 0 : i32
    %c0_i32_0 = arith.constant 0 : i32
    return %arg0, %c0_i32 : i32, i32
  }
  func.func @transform_1(%arg0: i32) -> (i32, i32) {
    %c0_i32 = arith.constant 0 : i32
    %c0_i32_0 = arith.constant 0 : i32
    %c0_i32_1 = arith.constant 0 : i32
    return %c0_i32, %c0_i32_0 : i32, i32
  }
  func.func @transform_2(%arg0: i32) -> (i32, i32) {
    %c0_i32 = arith.constant 0 : i32
    %c0_i32_0 = arith.constant 0 : i32
    %c0_i32_1 = arith.constant 0 : i32
    return %c0_i32, %c0_i32_0 : i32, i32
  }
  func.func @transform_3(%arg0: i32) -> (i32, i32) {
    %c0_i32 = arith.constant 0 : i32
    %c0_i32_0 = arith.constant 0 : i32
    %c0_i32_1 = arith.constant 0 : i32
    return %c0_i32, %c0_i32_0 : i32, i32
  }
  func.func @transform_4(%arg0: i32) -> (i32, i32) {
    %c0_i32 = arith.constant 0 : i32
    %c0_i32_0 = arith.constant 0 : i32
    %c0_i32_1 = arith.constant 0 : i32
    return %c0_i32, %c0_i32_0 : i32, i32
  }
  func.func @transform_5(%arg0: i32) -> (i32, i32) {
    %c0_i32 = arith.constant 0 : i32
    %c0_i32_0 = arith.constant 0 : i32
    %c0_i32_1 = arith.constant 0 : i32
    return %c0_i32, %c0_i32_0 : i32, i32
  }
  func.func @transform_6(%arg0: i32) -> (i32, i32) {
    %c0_i32 = arith.constant 0 : i32
    %c0_i32_0 = arith.constant 0 : i32
    %c0_i32_1 = arith.constant 0 : i32
    return %c0_i32, %c0_i32_0 : i32, i32
  }
  func.func @transform_7(%arg0: i32) -> (i32, i32) {
    %c0_i32 = arith.constant 0 : i32
    %c0_i32_0 = arith.constant 0 : i32
    return %arg0, %c0_i32 : i32, i32
  }
}

</mosaic_0001>

<llo_original>
// kernel: tpu_custom_call.1
$region0: #{tpu_custom_call.1}
  #allocation0 [shape = 'u32[]', space=smem, size = 0x4, offset = 0x4, fixed_abs, tag = 'smem constant byte address 0x4 - core index']
  #allocation1 [shape = 'u32[144,128]{1,0:T(1,128)}', space=vmem, size = 0x12000, scoped, tag = 'internal scratch']
  %s0 = inlined_call_operand.hbm [shape: f32[16,64], index: 0, kind: input, shape index: {}]
  %s1 = inlined_call_operand.hbm [shape: bf16[64,128], index: 1, kind: input, shape index: {}]
  %s2 = inlined_call_operand.vmem [shape: f32[1,128], index: 2, kind: input, shape index: {}]
  %s3 = inlined_call_operand.hbm [shape: bf16[128,128], index: 3, kind: input, shape index: {}]
  %s4 = inlined_call_operand.vmem [shape: f32[1,128], index: 4, kind: input, shape index: {}]
  %s5 = inlined_call_operand.hbm [shape: bf16[128,128], index: 5, kind: input, shape index: {}]
  %s6 = inlined_call_operand.vmem [shape: f32[1,128], index: 6, kind: input, shape index: {}]
  %s7 = inlined_call_operand.hbm [shape: f32[16,128], index: 7, kind: output, shape index: {}]
  %s8 = sld [smem:[#allocation0]]
  $region54: #{tpu_custom_call.1} parent=0
    _
  %s10 = ssub.s32 1, %s8
  %s11 = scalar_select 0, %s10, %s8
  $region1: #{tpu_custom_call.1} parent=0
    #allocation2 [shape = 'u8[8192]{0}', space=vmem, size = 0x2000, scoped, tag = 'input window, operand 0, single buffered']
    #allocation3 [shape = 's32[1]{0}', space=sflag, size = 0x4, scoped, tag = 'scoped memory for tpu_custom_call.1']
    #allocation4 [shape = 's32[1]{0}', space=sflag, size = 0x4, scoped, tag = 'scoped memory for tpu_custom_call.1']
    #allocation5 [shape = 'u8[16384]{0}', space=vmem, size = 0x4000, scoped, tag = 'input window, operand 1, single buffered']
    #allocation6 [shape = 's32[1]{0}', space=sflag, size = 0x4, scoped, tag = 'scoped memory for tpu_custom_call.1']
    #allocation7 [shape = 'u8[32768]{0}', space=vmem, size = 0x8000, scoped, tag = 'input window, operand 3, single buffered']
    #allocation8 [shape = 'u8[32768]{0}', space=vmem, size = 0x8000, scoped, tag = 'input window, operand 5, single buffered']
    #allocation9 [shape = 's32[1]{0}', space=sflag, size = 0x4, scoped, tag = 'scoped memory for tpu_custom_call.1']
    #allocation10 [shape = 'u8[8192]{0}', space=vmem, size = 0x2000, scoped, tag = 'output window, operand 0, single buffered']
    %12 = vsyncpa [#allocation3], 0
    %13 = vsyncpa [#allocation6], 0
    %14 = vsyncpa [#allocation9], 0
    %15 = vsyncpa [#allocation4], 0
    // Predicated region
    $region2: #{tpu_custom_call.1} parent=1 // pred_check
      _
    $region3: #{tpu_custom_call.1} parent=1 // pred_check_branch
      %17 = sbr.rel (0) target = $region5
    $region4: #{tpu_custom_call.1} parent=1 // pred_region
      %s19 = ssub.s32 256, 256
      %20 = vsyncadd [#allocation3], %s19
      %s21 = sshll.u32 [#allocation2], 4
      %s22 = int_to_ptr.vmem [resolvable:$true] %s21
      %27 = dma.hbm_to_vmem [thread:$0]  %s0, 256, %s22, [#allocation3], 128, 128, 8
    $region5: #{tpu_custom_call.1} parent=1 // pred_fallthru
      _
    // Predicated region
    $region6: #{tpu_custom_call.1} parent=1 // pred_check
      _
    $region7: #{tpu_custom_call.1} parent=1 // pred_check_branch
      %29 = sbr.rel (0) target = $region9
    $region8: #{tpu_custom_call.1} parent=1 // pred_region
      %s31 = ssub.s32 512, 512
      %32 = vsyncadd [#allocation6], %s31
      %s33 = sshll.u32 [#allocation5], 4
      %s34 = int_to_ptr.vmem [resolvable:$true] %s33
      %39 = dma.hbm_to_vmem [thread:$0]  %s1, 512, %s34, [#allocation6], 64, 64, 4
    $region9: #{tpu_custom_call.1} parent=1 // pred_fallthru
      _
    // Predicated region
    $region10: #{tpu_custom_call.1} parent=1 // pred_check
      _
    $region11: #{tpu_custom_call.1} parent=1 // pred_check_branch
      %41 = sbr.rel (0) target = $region13
    $region12: #{tpu_custom_call.1} parent=1 // pred_region
      _
    $region13: #{tpu_custom_call.1} parent=1 // pred_fallthru
      _
    // Predicated region
    $region14: #{tpu_custom_call.1} parent=1 // pred_check
      _
    $region15: #{tpu_custom_call.1} parent=1 // pred_check_branch
      %43 = sbr.rel (0) target = $region17
    $region16: #{tpu_custom_call.1} parent=1 // pred_region
      %s45 = ssub.s32 1024, 1024
      %46 = vsyncadd [#allocation6], %s45
      %s47 = sshll.u32 [#allocation7], 4
      %s48 = int_to_ptr.vmem [resolvable:$true] %s47
      %53 = dma.hbm_to_vmem [thread:$0]  %s3, 1024, %s48, [#allocation6], 64, 64, 4
    $region17: #{tpu_custom_call.1} parent=1 // pred_fallthru
      _
    // Predicated region
    $region18: #{tpu_custom_call.1} parent=1 // pred_check
      _
    $region19: #{tpu_custom_call.1} parent=1 // pred_check_branch
      %55 = sbr.rel (0) target = $region21
    $region20: #{tpu_custom_call.1} parent=1 // pred_region
      _
    $region21: #{tpu_custom_call.1} parent=1 // pred_fallthru
      _
    // Predicated region
    $region22: #{tpu_custom_call.1} parent=1 // pred_check
      _
    $region23: #{tpu_custom_call.1} parent=1 // pred_check_branch
      %57 = sbr.rel (0) target = $region25
    $region24: #{tpu_custom_call.1} parent=1 // pred_region
      %s59 = ssub.s32 1024, 1024
      %60 = vsyncadd [#allocation9], %s59
      %s61 = sshll.u32 [#allocation8], 4
      %s62 = int_to_ptr.vmem [resolvable:$true] %s61
      %67 = dma.hbm_to_vmem [thread:$0]  %s5, 1024, %s62, [#allocation9], 64, 64, 4
    $region25: #{tpu_custom_call.1} parent=1 // pred_fallthru
      _
    // Predicated region
    $region26: #{tpu_custom_call.1} parent=1 // pred_check
      _
    $region27: #{tpu_custom_call.1} parent=1 // pred_check_branch
      %69 = sbr.rel (0) target = $region29
    $region28: #{tpu_custom_call.1} parent=1 // pred_region
      _
    $region29: #{tpu_custom_call.1} parent=1 // pred_fallthru
      _
    // Predicated region
    $region30: #{tpu_custom_call.1} parent=1 // pred_check
      _
    $region31: #{tpu_custom_call.1} parent=1 // pred_check_branch
      %71 = sbr.rel (0) target = $region33
    $region32: #{tpu_custom_call.1} parent=1 // pred_region
      %72 = dma.done [#allocation3], 256
    $region33: #{tpu_custom_call.1} parent=1 // pred_fallthru
      _
    // Predicated region
    $region34: #{tpu_custom_call.1} parent=1 // pred_check
      _
    $region35: #{tpu_custom_call.1} parent=1 // pred_check_branch
      %74 = sbr.rel (0) target = $region37
    $region36: #{tpu_custom_call.1} parent=1 // pred_region
      %75 = dma.done [#allocation6], 512
    $region37: #{tpu_custom_call.1} parent=1 // pred_fallthru
      _
    // Predicated region
    $region38: #{tpu_custom_call.1} parent=1 // pred_check
      _
    $region39: #{tpu_custom_call.1} parent=1 // pred_check_branch
      %77 = sbr.rel (0) target = $region41
    $region40: #{tpu_custom_call.1} parent=1 // pred_region
      %78 = dma.done [#allocation6], 1024
    $region41: #{tpu_custom_call.1} parent=1 // pred_fallthru
      _
    // Predicated region
    $region42: #{tpu_custom_call.1} parent=1 // pred_check
      _
    $region43: #{tpu_custom_call.1} parent=1 // pred_check_branch
      %80 = sbr.rel (0) target = $region45
    $region44: #{tpu_custom_call.1} parent=1 // pred_region
      %81 = dma.done [#allocation9], 1024
    $region45: #{tpu_custom_call.1} parent=1 // pred_fallthru
      _
    %v83 = vld [vmem:[#allocation2] sm:$0xff]
    %v84 = vld [vmem:[#allocation2 + $0x8] sm:$0xff]
    %v85 = vpack.c.bf16 %v84, %v83
    %v86 = vld [vmem:[#allocation5] sm:$0xf]
    %v87 = vld [vmem:[#allocation5 + $0x4] sm:$0xf]
    %v88 = vld [vmem:[#allocation5 + $0x8] sm:$0xf]
    %v89 = vld [vmem:[#allocation5 + $0xc] sm:$0xf]
    %v90 = vld [vmem:[#allocation5 + $0x10] sm:$0xf]
    %v91 = vld [vmem:[#allocation5 + $0x14] sm:$0xf]
    %v92 = vld [vmem:[#allocation5 + $0x18] sm:$0xf]
    %v93 = vld [vmem:[#allocation5 + $0x1c] sm:$0xf]
    %v94 = vld [vmem:[%s2] sm:$0x1]
    %v96 = vlaneseq
    %v97 = vshrl.u32 %v96, 7
    %v98 = vsub.s32 0, %v97
    %v99 = vrot.slane %v94, %v98
    %v109 = vunpack.c.l.b16 %v86
    %v110 = vunpack.c.l.b16 %v87
    %v111 = vunpack.c.l.b16 %v88
    %v112 = vunpack.c.l.b16 %v89
    %v113 = vunpack.c.l.b16 %v90
    %v114 = vunpack.c.l.b16 %v91
    %v115 = vunpack.c.l.b16 %v92
    %v116 = vunpack.c.l.b16 %v93
    %v117 = vpack.c.b16 %v110, %v109
    %v118 = vpack.c.b16 %v112, %v111
    %v119 = vpack.c.b16 %v114, %v113
    %v120 = vpack.c.b16 %v116, %v115
    %vm125 = vcmask 523264
    %v127 = vsel %vm125, %v85, 0
    %129 = vmatprep.subr.bf16.mxu0 0
    %130 = vmatpush1.bf16.msra.mxu0 %v117
    %131 = vmatprep.subr.bf16.mxu0 0
    %132 = vmatpush1.bf16.msra.mxu0 %v118
    %133 = vmatprep.subr.bf16.mxu0 0
    %134 = vmatpush1.bf16.msra.mxu0 %v119
    %135 = vmatprep.subr.bf16.mxu0 0
    %136 = vmatpush1.bf16.msra.mxu0 %v120
    %137 = vmatprep.subr.bf16.mxu0 0
    %138 = vmatpush1.bf16.msra.mxu0 0
    %139 = vmatprep.subr.bf16.mxu0 0
    %140 = vmatpush1.bf16.msra.mxu0 0
    %141 = vmatprep.subr.bf16.mxu0 0
    %142 = vmatpush1.bf16.msra.mxu0 0
    %143 = vmatprep.subr.bf16.mxu0 0
    %144 = vmatpush1.bf16.msra.mxu0 0
    %145 = vmatprep.subr.bf16.mxu0 0
    %146 = vmatpush1.bf16.msra.mxu0 0
    %147 = vmatprep.subr.bf16.mxu0 0
    %148 = vmatpush1.bf16.msra.mxu0 0
    %149 = vmatprep.subr.bf16.mxu0 0
    %150 = vmatpush1.bf16.msra.mxu0 0
    %151 = vmatprep.subr.bf16.mxu0 0
    %152 = vmatpush1.bf16.msra.mxu0 0
    %153 = vmatprep.subr.bf16.mxu0 0
    %154 = vmatpush1.bf16.msra.mxu0 0
    %155 = vmatprep.subr.bf16.mxu0 0
    %156 = vmatpush1.bf16.msra.mxu0 0
    %157 = vmatprep.subr.bf16.mxu0 0
    %158 = vmatpush1.bf16.msra.mxu0 0
    %159 = vmatprep.subr.bf16.mxu0 0
    %160 = vmatpush1.bf16.msra.mxu0 0
    %161 = vmatprep.mubr.bf16.mxu0 0
    %162 = vmatmul.mubr.bf16.gmra.mrb[0].mxu0 %v127
    %v163 = vpop.f32.mrb[0].mxu0
    %v164 = vadd.f32 %v99, %v163
    %v165 = vpop.f32.mrb[0].mxu0
    %v166 = vpop.f32.mrb[0].mxu0
    %v167 = vadd.f32 %v99, %v166
    %v168 = vpop.f32.mrb[0].mxu0
    %169 = vdwg.mxu0
    %170 = vadd.xlane.f32.xlu0 %v164
    %v171 = vpop.xlane.xlu0 %170
    %172 = vadd.xlane.f32.xlu0 %v167
    %v173 = vpop.xlane.xlu0 %172
    %v174 = vmul.f32 %v171, 0.03125
    %v175 = vmul.f32 %v173, 0.03125
    %v176 = vsub.f32 %v164, %v174
    %v177 = vsub.f32 %v167, %v175
    %v178 = vlaneseq
    %v179 = vand.u32 %v178, 127
    %vm180 = vcmp.lt.s32.totalorder %v179, 32
    %v181 = vsel %vm180, %v176, 0.0
    %v182 = vsel %vm180, %v177, 0.0
    %v183 = vmul.f32 %v181, %v181
    %v184 = vmul.f32 %v182, %v182
    %185 = vadd.xlane.f32.xlu0 %v183
    %v186 = vpop.xlane.xlu0 %185
    %187 = vadd.xlane.f32.xlu0 %v184
    %v188 = vpop.xlane.xlu0 %187
    %v189 = vmul.f32 %v186, 0.03125
    %v190 = vmul.f32 %v188, 0.03125
    %v191 = vadd.f32 %v189, 1e-05
    %v192 = vadd.f32 %v190, 1e-05
    %v193 = vrsqrt.pop %v191
    %v194 = vrsqrt.pop %v192
    %v195 = vmul.f32 %v181, %v193
    %v196 = vmul.f32 %v182, %v194
    %v197 = vmin.f32 %v195, 20.0
    %v198 = vmin.f32 %v196, 20.0
    %v199 = vmul.f32 %v197, 1.442695
    %v200 = vpow.pop %v199
    %v201 = vmul.f32 %v198, 1.442695
    %v202 = vpow.pop %v201
    %v203 = vadd.f32 %v200, 2.0
    %v204 = vadd.f32 %v202, 2.0
    %v205 = vmul.f32 %v200, %v203
    %v206 = vmul.f32 %v202, %v204
    %v207 = vmul.f32 %v195, %v205
    %v208 = vmul.f32 %v196, %v206
    %v209 = vadd.f32 %v205, 2.0
    %v210 = vadd.f32 %v206, 2.0
    %v211 = vrcp.pop %v209
    %v212 = vrcp.pop %v210
    %v213 = vmul.f32 %v207, %v211
    %v214 = vmul.f32 %v208, %v212
    %v215 = vpack.c.bf16 %v214, %v213
    %v216 = vld [vmem:[#allocation7] sm:$0xf]
    %v217 = vld [vmem:[#allocation7 + $0x4] sm:$0xf]
    %v218 = vld [vmem:[#allocation7 + $0x8] sm:$0xf]
    %v219 = vld [vmem:[#allocation7 + $0xc] sm:$0xf]
    %v220 = vld [vmem:[#allocation7 + $0x10] sm:$0xf]
    %v221 = vld [vmem:[#allocation7 + $0x14] sm:$0xf]
    %v222 = vld [vmem:[#allocation7 + $0x18] sm:$0xf]
    %v223 = vld [vmem:[#allocation7 + $0x1c] sm:$0xf]
    %v224 = vld [vmem:[#allocation7 + $0x20] sm:$0xf]
    %v225 = vld [vmem:[#allocation7 + $0x24] sm:$0xf]
    %v226 = vld [vmem:[#allocation7 + $0x28] sm:$0xf]
    %v227 = vld [vmem:[#allocation7 + $0x2c] sm:$0xf]
    %v228 = vld [vmem:[#allocation7 + $0x30] sm:$0xf]
    %v229 = vld [vmem:[#allocation7 + $0x34] sm:$0xf]
    %v230 = vld [vmem:[#allocation7 + $0x38] sm:$0xf]
    %v231 = vld [vmem:[#allocation7 + $0x3c] sm:$0xf]
    %v232 = vld [vmem:[%s4] sm:$0x1]
    %v234 = vlaneseq
    %v235 = vshrl.u32 %v234, 7
    %v236 = vsub.s32 0, %v235
    %v237 = vrot.slane %v232, %v236
    %v255 = vunpack.c.l.b16 %v216
    %v256 = vunpack.c.l.b16 %v217
    %v257 = vunpack.c.l.b16 %v218
    %v258 = vunpack.c.l.b16 %v219
    %v259 = vunpack.c.l.b16 %v220
    %v260 = vunpack.c.l.b16 %v221
    %v261 = vunpack.c.l.b16 %v222
    %v262 = vunpack.c.l.b16 %v223
    %v263 = vunpack.c.l.b16 %v224
    %v264 = vunpack.c.l.b16 %v225
    %v265 = vunpack.c.l.b16 %v226
    %v266 = vunpack.c.l.b16 %v227
    %v267 = vunpack.c.l.b16 %v228
    %v268 = vunpack.c.l.b16 %v229
    %v269 = vunpack.c.l.b16 %v230
    %v270 = vunpack.c.l.b16 %v231
    %v271 = vpack.c.b16 %v256, %v255
    %v272 = vpack.c.b16 %v258, %v257
    %v273 = vpack.c.b16 %v260, %v259
    %v274 = vpack.c.b16 %v262, %v261
    %v275 = vpack.c.b16 %v264, %v263
    %v276 = vpack.c.b16 %v266, %v265
    %v277 = vpack.c.b16 %v268, %v267
    %v278 = vpack.c.b16 %v270, %v269
    %287 = vmatprep.subr.bf16.mxu0 0
    %288 = vmatpush1.bf16.msra.mxu0 %v271
    %289 = vmatprep.subr.bf16.mxu0 0
    %290 = vmatpush1.bf16.msra.mxu0 %v272
    %291 = vmatprep.subr.bf16.mxu0 0
    %292 = vmatpush1.bf16.msra.mxu0 %v273
    %293 = vmatprep.subr.bf16.mxu0 0
    %294 = vmatpush1.bf16.msra.mxu0 %v274
    %295 = vmatprep.subr.bf16.mxu0 0
    %296 = vmatpush1.bf16.msra.mxu0 %v275
    %297 = vmatprep.subr.bf16.mxu0 0
    %298 = vmatpush1.bf16.msra.mxu0 %v276
    %299 = vmatprep.subr.bf16.mxu0 0
    %300 = vmatpush1.bf16.msra.mxu0 %v277
    %301 = vmatprep.subr.bf16.mxu0 0
    %302 = vmatpush1.bf16.msra.mxu0 %v278
    %303 = vmatprep.subr.bf16.mxu0 0
    %304 = vmatpush1.bf16.msra.mxu0 0
    %305 = vmatprep.subr.bf16.mxu0 0
    %306 = vmatpush1.bf16.msra.mxu0 0
    %307 = vmatprep.subr.bf16.mxu0 0
    %308 = vmatpush1.bf16.msra.mxu0 0
    %309 = vmatprep.subr.bf16.mxu0 0
    %310 = vmatpush1.bf16.msra.mxu0 0
    %311 = vmatprep.subr.bf16.mxu0 0
    %312 = vmatpush1.bf16.msra.mxu0 0
    %313 = vmatprep.subr.bf16.mxu0 0
    %314 = vmatpush1.bf16.msra.mxu0 0
    %315 = vmatprep.subr.bf16.mxu0 0
    %316 = vmatpush1.bf16.msra.mxu0 0
    %317 = vmatprep.subr.bf16.mxu0 0
    %318 = vmatpush1.bf16.msra.mxu0 0
    %319 = vmatprep.mubr.bf16.mxu0 0
    %320 = vmatmul.mubr.bf16.gmra.mrb[0].mxu0 %v215
    %v321 = vpop.f32.mrb[0].mxu0
    %v322 = vadd.f32 %v237, %v321
    %v323 = vpop.f32.mrb[0].mxu0
    %v324 = vpop.f32.mrb[0].mxu0
    %v325 = vadd.f32 %v237, %v324
    %v326 = vpop.f32.mrb[0].mxu0
    %327 = vdwg.mxu0
    %328 = vadd.xlane.f32.xlu0 %v322
    %v329 = vpop.xlane.xlu0 %328
    %330 = vadd.xlane.f32.xlu0 %v325
    %v331 = vpop.xlane.xlu0 %330
    %v332 = vmul.f32 %v329, 0.0625
    %v333 = vmul.f32 %v331, 0.0625
    %v334 = vsub.f32 %v322, %v332
    %v335 = vsub.f32 %v325, %v333
    %vm336 = vcmp.lt.s32.totalorder %v179, 16
    %v337 = vsel %vm336, %v334, 0.0
    %v338 = vsel %vm336, %v335, 0.0
    %v339 = vmul.f32 %v337, %v337
    %v340 = vmul.f32 %v338, %v338
    %341 = vadd.xlane.f32.xlu0 %v339
    %v342 = vpop.xlane.xlu0 %341
    %343 = vadd.xlane.f32.xlu0 %v340
    %v344 = vpop.xlane.xlu0 %343
    %v345 = vmul.f32 %v342, 0.0625
    %v346 = vmul.f32 %v344, 0.0625
    %v347 = vadd.f32 %v345, 1e-05
    %v348 = vadd.f32 %v346, 1e-05
    %v349 = vrsqrt.pop %v347
    %v350 = vrsqrt.pop %v348
    %v351 = vmul.f32 %v337, %v349
    %v352 = vmul.f32 %v338, %v350
    %v353 = vmin.f32 %v351, 20.0
    %v354 = vmin.f32 %v352, 20.0
    %v355 = vmul.f32 %v353, 1.442695
    %v356 = vpow.pop %v355
    %v357 = vmul.f32 %v354, 1.442695
    %v358 = vpow.pop %v357
    %v359 = vadd.f32 %v356, 2.0
    %v360 = vadd.f32 %v358, 2.0
    %v361 = vmul.f32 %v356, %v359
    %v362 = vmul.f32 %v358, %v360
    %v363 = vmul.f32 %v351, %v361
    %v364 = vmul.f32 %v352, %v362
    %v365 = vadd.f32 %v361, 2.0
    %v366 = vadd.f32 %v362, 2.0
    %v367 = vrcp.pop %v365
    %v368 = vrcp.pop %v366
    %v369 = vmul.f32 %v363, %v367
    %v370 = vmul.f32 %v364, %v368
    %v371 = vpack.c.bf16 %v370, %v369
    %v372 = vld [vmem:[#allocation8] sm:$0xf]
    %v373 = vld [vmem:[#allocation8 + $0x4] sm:$0xf]
    %v374 = vld [vmem:[#allocation8 + $0x8] sm:$0xf]
    %v375 = vld [vmem:[#allocation8 + $0xc] sm:$0xf]
    %v376 = vld [vmem:[#allocation8 + $0x10] sm:$0xf]
    %v377 = vld [vmem:[#allocation8 + $0x14] sm:$0xf]
    %v378 = vld [vmem:[#allocation8 + $0x18] sm:$0xf]
    %v379 = vld [vmem:[#allocation8 + $0x1c] sm:$0xf]
    %v380 = vld [vmem:[#allocation8 + $0x20] sm:$0xf]
    %v381 = vld [vmem:[#allocation8 + $0x24] sm:$0xf]
    %v382 = vld [vmem:[#allocation8 + $0x28] sm:$0xf]
    %v383 = vld [vmem:[#allocation8 + $0x2c] sm:$0xf]
    %v384 = vld [vmem:[#allocation8 + $0x30] sm:$0xf]
    %v385 = vld [vmem:[#allocation8 + $0x34] sm:$0xf]
    %v386 = vld [vmem:[#allocation8 + $0x38] sm:$0xf]
    %v387 = vld [vmem:[#allocation8 + $0x3c] sm:$0xf]
    %v388 = vld [vmem:[%s6] sm:$0x1]
    %v390 = vlaneseq
    %v391 = vshrl.u32 %v390, 7
    %v392 = vsub.s32 0, %v391
    %v393 = vrot.slane %v388, %v392
    %v411 = vunpack.c.l.b16 %v372
    %v412 = vunpack.c.l.b16 %v373
    %v413 = vunpack.c.l.b16 %v374
    %v414 = vunpack.c.l.b16 %v375
    %v415 = vunpack.c.l.b16 %v376
    %v416 = vunpack.c.l.b16 %v377
    %v417 = vunpack.c.l.b16 %v378
    %v418 = vunpack.c.l.b16 %v379
    %v419 = vunpack.c.l.b16 %v380
    %v420 = vunpack.c.l.b16 %v381
    %v421 = vunpack.c.l.b16 %v382
    %v422 = vunpack.c.l.b16 %v383
    %v423 = vunpack.c.l.b16 %v384
    %v424 = vunpack.c.l.b16 %v385
    %v425 = vunpack.c.l.b16 %v386
    %v426 = vunpack.c.l.b16 %v387
    %v427 = vpack.c.b16 %v412, %v411
    %v428 = vpack.c.b16 %v414, %v413
    %v429 = vpack.c.b16 %v416, %v415
    %v430 = vpack.c.b16 %v418, %v417
    %v431 = vpack.c.b16 %v420, %v419
    %v432 = vpack.c.b16 %v422, %v421
    %v433 = vpack.c.b16 %v424, %v423
    %v434 = vpack.c.b16 %v426, %v425
    %443 = vmatprep.subr.bf16.mxu0 0
    %444 = vmatpush1.bf16.msra.mxu0 %v427
    %445 = vmatprep.subr.bf16.mxu0 0
    %446 = vmatpush1.bf16.msra.mxu0 %v428
    %447 = vmatprep.subr.bf16.mxu0 0
    %448 = vmatpush1.bf16.msra.mxu0 %v429
    %449 = vmatprep.subr.bf16.mxu0 0
    %450 = vmatpush1.bf16.msra.mxu0 %v430
    %451 = vmatprep.subr.bf16.mxu0 0
    %452 = vmatpush1.bf16.msra.mxu0 %v431
    %453 = vmatprep.subr.bf16.mxu0 0
    %454 = vmatpush1.bf16.msra.mxu0 %v432
    %455 = vmatprep.subr.bf16.mxu0 0
    %456 = vmatpush1.bf16.msra.mxu0 %v433
    %457 = vmatprep.subr.bf16.mxu0 0
    %458 = vmatpush1.bf16.msra.mxu0 %v434
    %459 = vmatprep.subr.bf16.mxu0 0
    %460 = vmatpush1.bf16.msra.mxu0 0
    %461 = vmatprep.subr.bf16.mxu0 0
    %462 = vmatpush1.bf16.msra.mxu0 0
    %463 = vmatprep.subr.bf16.mxu0 0
    %464 = vmatpush1.bf16.msra.mxu0 0
    %465 = vmatprep.subr.bf16.mxu0 0
    %466 = vmatpush1.bf16.msra.mxu0 0
    %467 = vmatprep.subr.bf16.mxu0 0
    %468 = vmatpush1.bf16.msra.mxu0 0
    %469 = vmatprep.subr.bf16.mxu0 0
    %470 = vmatpush1.bf16.msra.mxu0 0
    %471 = vmatprep.subr.bf16.mxu0 0
    %472 = vmatpush1.bf16.msra.mxu0 0
    %473 = vmatprep.subr.bf16.mxu0 0
    %474 = vmatpush1.bf16.msra.mxu0 0
    %475 = vmatprep.mubr.bf16.mxu0 0
    %476 = vmatmul.mubr.bf16.gmra.mrb[0].mxu0 %v371
    %v477 = vpop.f32.mrb[0].mxu0
    %v478 = vadd.f32 %v393, %v477
    %v479 = vpop.f32.mrb[0].mxu0
    %v480 = vpop.f32.mrb[0].mxu0
    %v481 = vadd.f32 %v393, %v480
    %v482 = vpop.f32.mrb[0].mxu0
    %483 = vdwg.mxu0
    %484 = vst [vmem:[#allocation10] sm:$0xff] %v478
    %485 = vst [vmem:[#allocation10 + $0x8] sm:$0xff] %v481
    // Predicated region
    $region46: #{tpu_custom_call.1} parent=1 // pred_check
      _
    $region47: #{tpu_custom_call.1} parent=1 // pred_check_branch
      %487 = sbr.rel (0) target = $region49
    $region48: #{tpu_custom_call.1} parent=1 // pred_region
      %s489 = ssub.s32 256, 256
      %490 = vsyncadd [#allocation4], %s489
      %s491 = sshll.u32 [#allocation10], 4
      %s492 = int_to_ptr.vmem [resolvable:$true] %s491
      %497 = dma.vmem_to_hbm [thread:$0]  %s492, 256, %s7, [#allocation4], 128, 128, 8
    $region49: #{tpu_custom_call.1} parent=1 // pred_fallthru
      _
    // Predicated region
    $region50: #{tpu_custom_call.1} parent=1 // pred_check
      _
    $region51: #{tpu_custom_call.1} parent=1 // pred_check_branch
      %499 = sbr.rel (0) target = $region53
    $region52: #{tpu_custom_call.1} parent=1 // pred_region
      %500 = dma.done [#allocation4], 256
    $region53: #{tpu_custom_call.1} parent=1 // pred_fallthru
      _
    %501 = vsyncpa [#allocation3], 1
    %502 = vsyncpa [#allocation6], 1
    %503 = vsyncpa [#allocation9], 1
    %504 = vsyncpa [#allocation4], 1

</llo_original>
